<compile_context>
chip_gen: v5e
topology: v5e:2x2
jax: 0.10.0
libtpu: 0.0.40
codegen_flags: <defaults>
</compile_context>

<pallas_src>
import functools

import jax
import jax.numpy as jnp
from jax.experimental import pallas as pl
from jax.experimental.pallas import tpu as pltpu


def _stdconv_kernel(xp_ref, w_ref, prm_ref, o_ref, *, KH, KW, stride, OH, OW, Wh):
    """One grid step = one batch element.

    xp_ref : (1, stride*stride, P, Cin)  bf16  flattened phase planes (row-major, padded)
    w_ref  : (KH*KW, Cin, Cout)          bf16  per-tap weights
    prm_ref: (3, Cout)                   f32   rows = [conv bias, BN scale, BN shift]
    o_ref  : (1, Cout, OH*Wh)            f32   channel-major output (junk col per row)
    """
    L = OH * Wh
    cout = o_ref.shape[1]

    acc = jnp.zeros((L, cout), jnp.float32)
    for kh in range(KH):
        for kw in range(KW):
            phase = (kh % stride) * stride + (kw % stride)
            s0 = (kh // stride) * Wh + (kw // stride)
            plane = xp_ref.at[0, phase]                 # (P, Cin) ref view, no load
            tap = plane[pl.ds(s0, L), :]                # contiguous row-slab, (L, Cin) bf16
            w_t = w_ref[kh * KW + kw]                   # (Cin, Cout) bf16
            acc += jnp.dot(tap, w_t, preferred_element_type=jnp.float32)

    acc = acc + prm_ref[0:1, :]                         # conv bias
    acc = jnp.maximum(acc, 0.0)                         # ReLU
    acc = acc * prm_ref[1:2, :] + prm_ref[2:3, :]       # BatchNorm (eval) scale/shift
    # Dropout(eval) == identity.

    # Single in-kernel transpose -> channel-major store with the (large) flattened
    # spatial axis on lanes (lane-dense, and already NCHW-ordered in HBM).
    o_ref[0] = acc.T.astype(o_ref.dtype)


def std_conv_forward(x_nchw, weight_oihw, bias, gamma, beta,
                     running_mean, running_var, *, stride=2, padding=1,
                     eps=1e-5, out_dtype=jnp.float32):
    N, Cin, H, W = x_nchw.shape
    Cout, _, KH, KW = weight_oihw.shape
    OH = (H + 2 * padding - KH) // stride + 1
    OW = (W + 2 * padding - KW) // stride + 1

    drmax = (KH - 1) // stride
    dcmax = (KW - 1) // stride
    Hh, Wh = OH + drmax, OW + dcmax          # per-phase plane dims
    n_phase = stride * stride
    L = OH * Wh                              # accumulator rows (incl. dcmax junk cols/row)

    # ---- wrapper glue: pad + space-to-depth + flatten + bf16 (one fused XLA pass) ----
    pad_b = stride * Hh - H - padding
    pad_r = stride * Wh - W - padding
    assert pad_b >= 0 and pad_r >= 0
    x_pad = jnp.pad(x_nchw, ((0, 0), (0, 0), (padding, pad_b), (padding, pad_r)))
    xp = x_pad.reshape(N, Cin, Hh, stride, Wh, stride)
    xp = xp.transpose(0, 3, 5, 2, 4, 1)                       # (N, ph, pw, Hh, Wh, Cin)
    xp = xp.reshape(N, n_phase, Hh * Wh, Cin)
    P = ((Hh * Wh + dcmax + 7) // 8) * 8                      # slack for slab over-read
    xp = jnp.pad(xp, ((0, 0), (0, 0), (0, P - Hh * Wh), (0, 0))).astype(jnp.bfloat16)

    # per-tap weights, (tap, Cin, Cout) to match the (L, Cin) x (Cin, Cout) dots
    w_taps = jnp.transpose(weight_oihw, (2, 3, 1, 0)).reshape(KH * KW, Cin, Cout)
    w_taps = w_taps.astype(jnp.bfloat16)

    # eval-mode BN folded into scale/shift; packed with the conv bias into one operand
    scale = gamma / jnp.sqrt(running_var + eps)
    shift = beta - running_mean * scale
    params = jnp.stack([bias, scale, shift]).astype(jnp.float32)    # (3, Cout)

    # explicit VMEM budget (v7x only has 64 MiB physical; leave headroom)
    block_bytes = n_phase * P * Cin * 2 + Cout * L * 4
    vmem_limit = int(min(max(6 * block_bytes, 32 * 2 ** 20), 48 * 2 ** 20))

    kernel = functools.partial(_stdconv_kernel, KH=KH, KW=KW, stride=stride,
                               OH=OH, OW=OW, Wh=Wh)

    out_padded = pl.pallas_call(
        kernel,
        out_shape=jax.ShapeDtypeStruct((N, Cout, L), out_dtype),
        grid_spec=pltpu.PrefetchScalarGridSpec(
            num_scalar_prefetch=0,
            grid=(N,),                                   # one step per image; batch axis
            in_specs=[
                pl.BlockSpec((1, n_phase, P, Cin), lambda n: (n, 0, 0, 0)),
                pl.BlockSpec((KH * KW, Cin, Cout), lambda n: (0, 0, 0)),   # grid-invariant
                pl.BlockSpec((3, Cout), lambda n: (0, 0)),                 # grid-invariant
            ],
            out_specs=pl.BlockSpec((1, Cout, L), lambda n: (n, 0, 0)),
        ),
        compiler_params=pltpu.CompilerParams(
            dimension_semantics=("parallel",),           # shards batch across v7x TCs
            vmem_limit_bytes=vmem_limit),
    )(xp, w_taps, params)

    # Output is already channel-major; just drop the dcmax junk column(s) per output row.
    out = out_padded.reshape(N, Cout, OH, Wh)[:, :, :, :OW]
    return out


def _reference(x_nchw, weight_oihw, bias, gamma, beta, running_mean,
               running_var, *, stride=2, padding=1, eps=1e-5):
    conv = jax.lax.conv_general_dilated(
        x_nchw, weight_oihw, window_strides=(stride, stride),
        padding=((padding, padding), (padding, padding)),
        dimension_numbers=("NCHW", "OIHW", "NCHW"))
    conv = conv + bias.reshape(1, -1, 1, 1)
    r = jnp.maximum(conv, 0.0)
    inv = gamma / jnp.sqrt(running_var + eps)
    bn = (r - running_mean.reshape(1, -1, 1, 1)) * inv.reshape(1, -1, 1, 1) \
         + beta.reshape(1, -1, 1, 1)
    return bn  # dropout is identity in eval mode


if __name__ == "__main__":
    key = jax.random.PRNGKey(0)
    k_x, k_w, k_b, k_g, k_be, k_m, k_v = jax.random.split(key, 7)

    N, Cin, H, W = 2, 4, 16, 16
    Cout, KH, KW = 8, 3, 3

    x = jax.random.normal(k_x, (N, Cin, H, W), dtype=jnp.float32)
    weight = jax.random.normal(k_w, (Cout, Cin, KH, KW), dtype=jnp.float32) * 0.1
    bias = jax.random.normal(k_b, (Cout,), dtype=jnp.float32) * 0.1
    gamma = 1.0 + 0.1 * jax.random.normal(k_g, (Cout,), dtype=jnp.float32)
    beta = 0.1 * jax.random.normal(k_be, (Cout,), dtype=jnp.float32)
    running_mean = 0.1 * jax.random.normal(k_m, (Cout,), dtype=jnp.float32)
    running_var = 1.0 + 0.1 * jax.random.uniform(k_v, (Cout,), dtype=jnp.float32)

    fwd = jax.jit(std_conv_forward)
    out = fwd(x, weight, bias, gamma, beta, running_mean, running_var)
    out = jax.block_until_ready(out)

    ref = _reference(x, weight, bias, gamma, beta, running_mean, running_var)
    assert out.shape == (N, Cout, 8, 8), out.shape
    # bf16 inputs / f32 accumulation -> tolerance loosened vs. the pure-f32 path
    assert jnp.allclose(out, ref, atol=2e-2, rtol=2e-2), \
        float(jnp.max(jnp.abs(out - ref)))

    print("KERNEL_OK")
</pallas_src>

<mosaic_0001>
module attributes {stable_mosaic.version = 11 : i64} {
  func.func @_stdconv_kernel(%arg0: i32, %arg1: memref<1x4x88x4xbf16, #tpu.memory_space<vmem>>, %arg2: memref<9x4x8xbf16, #tpu.memory_space<vmem>>, %arg3: memref<3x8xf32, #tpu.memory_space<vmem>>, %arg4: memref<1x8x72xf32, #tpu.memory_space<vmem>>) attributes {dimension_semantics = [#tpu.dimension_semantics<parallel>], iteration_bounds = array<i64: 2>, scalar_prefetch = 0 : i64, scratch_operands = 0 : i64, tpu.core_type = #tpu.core_type<tc>, window_params = [{transform_indices = @transform_0, window_bounds = array<i64: 1, 4, 88, 4>}, {pipeline_mode = #tpu.pipeline_mode<synchronous>, transform_indices = @transform_1, window_bounds = array<i64: 9, 4, 8>}, {pipeline_mode = #tpu.pipeline_mode<synchronous>, transform_indices = @transform_2, window_bounds = array<i64: 3, 8>}, {transform_indices = @transform_3, window_bounds = array<i64: 1, 8, 72>}]} {
    %cst = arith.constant 0.000000e+00 : f32
    %0 = vector.broadcast %cst : f32 to vector<72x8xf32>
    %c0_i32 = arith.constant 0 : i32
    %c0_i32_0 = arith.constant 0 : i32
    %c0_i32_1 = arith.constant 0 : i32
    %c0_i32_2 = arith.constant 0 : i32
    %1 = tpu.memref_slice %arg1[%c0_i32, %c0_i32_0, %c0_i32_1, %c0_i32_2] : memref<1x4x88x4xbf16, #tpu.memory_space<vmem>> -> memref<1x1x88x4xbf16, #tpu.memory_space<vmem>>
    %2 = tpu.memref_squeeze %1 : memref<1x1x88x4xbf16, #tpu.memory_space<vmem>> -> memref<88x4xbf16, #tpu.memory_space<vmem>>
    %c0 = arith.constant 0 : index
    %c0_3 = arith.constant 0 : index
    %3 = vector.load %2[%c0, %c0_3] : memref<88x4xbf16, #tpu.memory_space<vmem>>, vector<72x4xbf16>
    %c0_4 = arith.constant 0 : index
    %c0_5 = arith.constant 0 : index
    %c0_6 = arith.constant 0 : index
    %4 = vector.load %arg2[%c0_4, %c0_5, %c0_6] : memref<9x4x8xbf16, #tpu.memory_space<vmem>>, vector<1x4x8xbf16>
    %5 = vector.shape_cast %4 : vector<1x4x8xbf16> to vector<4x8xbf16>
    %cst_7 = arith.constant dense<0.000000e+00> : vector<72x8xf32>
    %6 = tpu.matmul %3, %5, %cst_7 {dimension_numbers = #tpu.dot_dimension_numbers<[1], [0], [0], [1], [0, 0, 1, 1], [], []>} : vector<72x4xbf16>, vector<4x8xbf16>, vector<72x8xf32> -> vector<72x8xf32>
    %7 = arith.addf %0, %6 : vector<72x8xf32>
    %c0_i32_8 = arith.constant 0 : i32
    %c1_i32 = arith.constant 1 : i32
    %c0_i32_9 = arith.constant 0 : i32
    %c0_i32_10 = arith.constant 0 : i32
    %8 = tpu.memref_slice %arg1[%c0_i32_8, %c1_i32, %c0_i32_9, %c0_i32_10] : memref<1x4x88x4xbf16, #tpu.memory_space<vmem>> -> memref<1x1x88x4xbf16, #tpu.memory_space<vmem>>
    %9 = tpu.memref_squeeze %8 : memref<1x1x88x4xbf16, #tpu.memory_space<vmem>> -> memref<88x4xbf16, #tpu.memory_space<vmem>>
    %c0_11 = arith.constant 0 : index
    %c0_12 = arith.constant 0 : index
    %10 = vector.load %9[%c0_11, %c0_12] : memref<88x4xbf16, #tpu.memory_space<vmem>>, vector<72x4xbf16>
    %c1 = arith.constant 1 : index
    %c0_13 = arith.constant 0 : index
    %c0_14 = arith.constant 0 : index
    %11 = vector.load %arg2[%c1, %c0_13, %c0_14] : memref<9x4x8xbf16, #tpu.memory_space<vmem>>, vector<1x4x8xbf16>
    %12 = vector.shape_cast %11 : vector<1x4x8xbf16> to vector<4x8xbf16>
    %cst_15 = arith.constant dense<0.000000e+00> : vector<72x8xf32>
    %13 = tpu.matmul %10, %12, %cst_15 {dimension_numbers = #tpu.dot_dimension_numbers<[1], [0], [0], [1], [0, 0, 1, 1], [], []>} : vector<72x4xbf16>, vector<4x8xbf16>, vector<72x8xf32> -> vector<72x8xf32>
    %14 = arith.addf %7, %13 : vector<72x8xf32>
    %c0_i32_16 = arith.constant 0 : i32
    %c0_i32_17 = arith.constant 0 : i32
    %c0_i32_18 = arith.constant 0 : i32
    %c0_i32_19 = arith.constant 0 : i32
    %15 = tpu.memref_slice %arg1[%c0_i32_16, %c0_i32_17, %c0_i32_18, %c0_i32_19] : memref<1x4x88x4xbf16, #tpu.memory_space<vmem>> -> memref<1x1x88x4xbf16, #tpu.memory_space<vmem>>
    %16 = tpu.memref_squeeze %15 : memref<1x1x88x4xbf16, #tpu.memory_space<vmem>> -> memref<88x4xbf16, #tpu.memory_space<vmem>>
    %c1_20 = arith.constant 1 : index
    %c0_21 = arith.constant 0 : index
    %17 = vector.load %16[%c1_20, %c0_21] : memref<88x4xbf16, #tpu.memory_space<vmem>>, vector<72x4xbf16>
    %c2 = arith.constant 2 : index
    %c0_22 = arith.constant 0 : index
    %c0_23 = arith.constant 0 : index
    %18 = vector.load %arg2[%c2, %c0_22, %c0_23] : memref<9x4x8xbf16, #tpu.memory_space<vmem>>, vector<1x4x8xbf16>
    %19 = vector.shape_cast %18 : vector<1x4x8xbf16> to vector<4x8xbf16>
    %cst_24 = arith.constant dense<0.000000e+00> : vector<72x8xf32>
    %20 = tpu.matmul %17, %19, %cst_24 {dimension_numbers = #tpu.dot_dimension_numbers<[1], [0], [0], [1], [0, 0, 1, 1], [], []>} : vector<72x4xbf16>, vector<4x8xbf16>, vector<72x8xf32> -> vector<72x8xf32>
    %21 = arith.addf %14, %20 : vector<72x8xf32>
    %c0_i32_25 = arith.constant 0 : i32
    %c2_i32 = arith.constant 2 : i32
    %c0_i32_26 = arith.constant 0 : i32
    %c0_i32_27 = arith.constant 0 : i32
    %22 = tpu.memref_slice %arg1[%c0_i32_25, %c2_i32, %c0_i32_26, %c0_i32_27] : memref<1x4x88x4xbf16, #tpu.memory_space<vmem>> -> memref<1x1x88x4xbf16, #tpu.memory_space<vmem>>
    %23 = tpu.memref_squeeze %22 : memref<1x1x88x4xbf16, #tpu.memory_space<vmem>> -> memref<88x4xbf16, #tpu.memory_space<vmem>>
    %c0_28 = arith.constant 0 : index
    %c0_29 = arith.constant 0 : index
    %24 = vector.load %23[%c0_28, %c0_29] : memref<88x4xbf16, #tpu.memory_space<vmem>>, vector<72x4xbf16>
    %c3 = arith.constant 3 : index
    %c0_30 = arith.constant 0 : index
    %c0_31 = arith.constant 0 : index
    %25 = vector.load %arg2[%c3, %c0_30, %c0_31] : memref<9x4x8xbf16, #tpu.memory_space<vmem>>, vector<1x4x8xbf16>
    %26 = vector.shape_cast %25 : vector<1x4x8xbf16> to vector<4x8xbf16>
    %cst_32 = arith.constant dense<0.000000e+00> : vector<72x8xf32>
    %27 = tpu.matmul %24, %26, %cst_32 {dimension_numbers = #tpu.dot_dimension_numbers<[1], [0], [0], [1], [0, 0, 1, 1], [], []>} : vector<72x4xbf16>, vector<4x8xbf16>, vector<72x8xf32> -> vector<72x8xf32>
    %28 = arith.addf %21, %27 : vector<72x8xf32>
    %c0_i32_33 = arith.constant 0 : i32
    %c3_i32 = arith.constant 3 : i32
    %c0_i32_34 = arith.constant 0 : i32
    %c0_i32_35 = arith.constant 0 : i32
    %29 = tpu.memref_slice %arg1[%c0_i32_33, %c3_i32, %c0_i32_34, %c0_i32_35] : memref<1x4x88x4xbf16, #tpu.memory_space<vmem>> -> memref<1x1x88x4xbf16, #tpu.memory_space<vmem>>
    %30 = tpu.memref_squeeze %29 : memref<1x1x88x4xbf16, #tpu.memory_space<vmem>> -> memref<88x4xbf16, #tpu.memory_space<vmem>>
    %c0_36 = arith.constant 0 : index
    %c0_37 = arith.constant 0 : index
    %31 = vector.load %30[%c0_36, %c0_37] : memref<88x4xbf16, #tpu.memory_space<vmem>>, vector<72x4xbf16>
    %c4 = arith.constant 4 : index
    %c0_38 = arith.constant 0 : index
    %c0_39 = arith.constant 0 : index
    %32 = vector.load %arg2[%c4, %c0_38, %c0_39] : memref<9x4x8xbf16, #tpu.memory_space<vmem>>, vector<1x4x8xbf16>
    %33 = vector.shape_cast %32 : vector<1x4x8xbf16> to vector<4x8xbf16>
    %cst_40 = arith.constant dense<0.000000e+00> : vector<72x8xf32>
    %34 = tpu.matmul %31, %33, %cst_40 {dimension_numbers = #tpu.dot_dimension_numbers<[1], [0], [0], [1], [0, 0, 1, 1], [], []>} : vector<72x4xbf16>, vector<4x8xbf16>, vector<72x8xf32> -> vector<72x8xf32>
    %35 = arith.addf %28, %34 : vector<72x8xf32>
    %c0_i32_41 = arith.constant 0 : i32
    %c2_i32_42 = arith.constant 2 : i32
    %c0_i32_43 = arith.constant 0 : i32
    %c0_i32_44 = arith.constant 0 : i32
    %36 = tpu.memref_slice %arg1[%c0_i32_41, %c2_i32_42, %c0_i32_43, %c0_i32_44] : memref<1x4x88x4xbf16, #tpu.memory_space<vmem>> -> memref<1x1x88x4xbf16, #tpu.memory_space<vmem>>
    %37 = tpu.memref_squeeze %36 : memref<1x1x88x4xbf16, #tpu.memory_space<vmem>> -> memref<88x4xbf16, #tpu.memory_space<vmem>>
    %c1_45 = arith.constant 1 : index
    %c0_46 = arith.constant 0 : index
    %38 = vector.load %37[%c1_45, %c0_46] : memref<88x4xbf16, #tpu.memory_space<vmem>>, vector<72x4xbf16>
    %c5 = arith.constant 5 : index
    %c0_47 = arith.constant 0 : index
    %c0_48 = arith.constant 0 : index
    %39 = vector.load %arg2[%c5, %c0_47, %c0_48] : memref<9x4x8xbf16, #tpu.memory_space<vmem>>, vector<1x4x8xbf16>
    %40 = vector.shape_cast %39 : vector<1x4x8xbf16> to vector<4x8xbf16>
    %cst_49 = arith.constant dense<0.000000e+00> : vector<72x8xf32>
    %41 = tpu.matmul %38, %40, %cst_49 {dimension_numbers = #tpu.dot_dimension_numbers<[1], [0], [0], [1], [0, 0, 1, 1], [], []>} : vector<72x4xbf16>, vector<4x8xbf16>, vector<72x8xf32> -> vector<72x8xf32>
    %42 = arith.addf %35, %41 : vector<72x8xf32>
    %c0_i32_50 = arith.constant 0 : i32
    %c0_i32_51 = arith.constant 0 : i32
    %c0_i32_52 = arith.constant 0 : i32
    %c0_i32_53 = arith.constant 0 : i32
    %43 = tpu.memref_slice %arg1[%c0_i32_50, %c0_i32_51, %c0_i32_52, %c0_i32_53] : memref<1x4x88x4xbf16, #tpu.memory_space<vmem>> -> memref<1x1x88x4xbf16, #tpu.memory_space<vmem>>
    %44 = tpu.memref_squeeze %43 : memref<1x1x88x4xbf16, #tpu.memory_space<vmem>> -> memref<88x4xbf16, #tpu.memory_space<vmem>>
    %c9 = arith.constant 9 : index
    %c0_54 = arith.constant 0 : index
    %45 = vector.load %44[%c9, %c0_54] : memref<88x4xbf16, #tpu.memory_space<vmem>>, vector<72x4xbf16>
    %c6 = arith.constant 6 : index
    %c0_55 = arith.constant 0 : index
    %c0_56 = arith.constant 0 : index
    %46 = vector.load %arg2[%c6, %c0_55, %c0_56] : memref<9x4x8xbf16, #tpu.memory_space<vmem>>, vector<1x4x8xbf16>
    %47 = vector.shape_cast %46 : vector<1x4x8xbf16> to vector<4x8xbf16>
    %cst_57 = arith.constant dense<0.000000e+00> : vector<72x8xf32>
    %48 = tpu.matmul %45, %47, %cst_57 {dimension_numbers = #tpu.dot_dimension_numbers<[1], [0], [0], [1], [0, 0, 1, 1], [], []>} : vector<72x4xbf16>, vector<4x8xbf16>, vector<72x8xf32> -> vector<72x8xf32>
    %49 = arith.addf %42, %48 : vector<72x8xf32>
    %c0_i32_58 = arith.constant 0 : i32
    %c1_i32_59 = arith.constant 1 : i32
    %c0_i32_60 = arith.constant 0 : i32
    %c0_i32_61 = arith.constant 0 : i32
    %50 = tpu.memref_slice %arg1[%c0_i32_58, %c1_i32_59, %c0_i32_60, %c0_i32_61] : memref<1x4x88x4xbf16, #tpu.memory_space<vmem>> -> memref<1x1x88x4xbf16, #tpu.memory_space<vmem>>
    %51 = tpu.memref_squeeze %50 : memref<1x1x88x4xbf16, #tpu.memory_space<vmem>> -> memref<88x4xbf16, #tpu.memory_space<vmem>>
    %c9_62 = arith.constant 9 : index
    %c0_63 = arith.constant 0 : index
    %52 = vector.load %51[%c9_62, %c0_63] : memref<88x4xbf16, #tpu.memory_space<vmem>>, vector<72x4xbf16>
    %c7 = arith.constant 7 : index
    %c0_64 = arith.constant 0 : index
    %c0_65 = arith.constant 0 : index
    %53 = vector.load %arg2[%c7, %c0_64, %c0_65] : memref<9x4x8xbf16, #tpu.memory_space<vmem>>, vector<1x4x8xbf16>
    %54 = vector.shape_cast %53 : vector<1x4x8xbf16> to vector<4x8xbf16>
    %cst_66 = arith.constant dense<0.000000e+00> : vector<72x8xf32>
    %55 = tpu.matmul %52, %54, %cst_66 {dimension_numbers = #tpu.dot_dimension_numbers<[1], [0], [0], [1], [0, 0, 1, 1], [], []>} : vector<72x4xbf16>, vector<4x8xbf16>, vector<72x8xf32> -> vector<72x8xf32>
    %56 = arith.addf %49, %55 : vector<72x8xf32>
    %c0_i32_67 = arith.constant 0 : i32
    %c0_i32_68 = arith.constant 0 : i32
    %c0_i32_69 = arith.constant 0 : i32
    %c0_i32_70 = arith.constant 0 : i32
    %57 = tpu.memref_slice %arg1[%c0_i32_67, %c0_i32_68, %c0_i32_69, %c0_i32_70] : memref<1x4x88x4xbf16, #tpu.memory_space<vmem>> -> memref<1x1x88x4xbf16, #tpu.memory_space<vmem>>
    %58 = tpu.memref_squeeze %57 : memref<1x1x88x4xbf16, #tpu.memory_space<vmem>> -> memref<88x4xbf16, #tpu.memory_space<vmem>>
    %c10 = arith.constant 10 : index
    %c0_71 = arith.constant 0 : index
    %59 = vector.load %58[%c10, %c0_71] : memref<88x4xbf16, #tpu.memory_space<vmem>>, vector<72x4xbf16>
    %c8 = arith.constant 8 : index
    %c0_72 = arith.constant 0 : index
    %c0_73 = arith.constant 0 : index
    %60 = vector.load %arg2[%c8, %c0_72, %c0_73] : memref<9x4x8xbf16, #tpu.memory_space<vmem>>, vector<1x4x8xbf16>
    %61 = vector.shape_cast %60 : vector<1x4x8xbf16> to vector<4x8xbf16>
    %cst_74 = arith.constant dense<0.000000e+00> : vector<72x8xf32>
    %62 = tpu.matmul %59, %61, %cst_74 {dimension_numbers = #tpu.dot_dimension_numbers<[1], [0], [0], [1], [0, 0, 1, 1], [], []>} : vector<72x4xbf16>, vector<4x8xbf16>, vector<72x8xf32> -> vector<72x8xf32>
    %63 = arith.addf %56, %62 : vector<72x8xf32>
    %c0_75 = arith.constant 0 : index
    %c0_76 = arith.constant 0 : index
    %64 = vector.load %arg3[%c0_75, %c0_76] : memref<3x8xf32, #tpu.memory_space<vmem>>, vector<1x8xf32>
    %65 = vector.broadcast %64 : vector<1x8xf32> to vector<72x8xf32>
    %66 = arith.addf %63, %65 : vector<72x8xf32>
    %cst_77 = arith.constant 0.000000e+00 : f32
    %67 = vector.broadcast %cst_77 : f32 to vector<72x8xf32>
    %68 = arith.maximumf %66, %67 : vector<72x8xf32>
    %c1_78 = arith.constant 1 : index
    %c0_79 = arith.constant 0 : index
    %69 = vector.load %arg3[%c1_78, %c0_79] : memref<3x8xf32, #tpu.memory_space<vmem>>, vector<1x8xf32>
    %70 = vector.broadcast %69 : vector<1x8xf32> to vector<72x8xf32>
    %71 = arith.mulf %68, %70 : vector<72x8xf32>
    %c2_80 = arith.constant 2 : index
    %c0_81 = arith.constant 0 : index
    %72 = vector.load %arg3[%c2_80, %c0_81] : memref<3x8xf32, #tpu.memory_space<vmem>>, vector<1x8xf32>
    %73 = vector.broadcast %72 : vector<1x8xf32> to vector<72x8xf32>
    %74 = arith.addf %71, %73 : vector<72x8xf32>
    %75 = tpu.transpose %74, [1, 0] : vector<72x8xf32> -> vector<8x72xf32>
    %c0_82 = arith.constant 0 : index
    %c0_83 = arith.constant 0 : index
    %c0_84 = arith.constant 0 : index
    %76 = vector.load %arg4[%c0_82, %c0_83, %c0_84] : memref<1x8x72xf32, #tpu.memory_space<vmem>>, vector<1x8x72xf32>
    %77 = vector.shape_cast %76 : vector<1x8x72xf32> to vector<8x72xf32>
    %78 = vector.shape_cast %75 : vector<8x72xf32> to vector<1x8x72xf32>
    tpu.vector_store %arg4[%c0_82, %c0_83, %c0_84], %78 {strides = array<i32>} : memref<1x8x72xf32, #tpu.memory_space<vmem>>, vector<1x8x72xf32>,
    return
  }
  func.func @transform_0(%arg0: i32) -> (i32, i32, i32, i32) {
    %c0_i32 = arith.constant 0 : i32
    %c0_i32_0 = arith.constant 0 : i32
    %c0_i32_1 = arith.constant 0 : i32
    %c0_i32_2 = arith.constant 0 : i32
    return %arg0, %c0_i32, %c0_i32_0, %c0_i32_1 : i32, i32, i32, i32
  }
  func.func @transform_1(%arg0: i32) -> (i32, i32, i32) {
    %c0_i32 = arith.constant 0 : i32
    %c0_i32_0 = arith.constant 0 : i32
    %c0_i32_1 = arith.constant 0 : i32
    %c0_i32_2 = arith.constant 0 : i32
    return %c0_i32, %c0_i32_0, %c0_i32_1 : i32, i32, i32
  }
  func.func @transform_2(%arg0: i32) -> (i32, i32) {
    %c0_i32 = arith.constant 0 : i32
    %c0_i32_0 = arith.constant 0 : i32
    %c0_i32_1 = arith.constant 0 : i32
    return %c0_i32, %c0_i32_0 : i32, i32
  }
  func.func @transform_3(%arg0: i32) -> (i32, i32, i32) {
    %c0_i32 = arith.constant 0 : i32
    %c0_i32_0 = arith.constant 0 : i32
    %c0_i32_1 = arith.constant 0 : i32
    return %arg0, %c0_i32, %c0_i32_0 : i32, i32, i32
  }
}

</mosaic_0001>

<llo_original>
// kernel: std_conv_forward.1
$region0: #{std_conv_forward.1}
  #allocation0 [shape = 'u32[]', space=smem, size = 0x4, offset = 0x4, fixed_abs, tag = 'smem constant byte address 0x4 - core index']
  #allocation1 [shape = 'u32[72,128]{1,0:T(1,128)}', space=vmem, size = 0x9000, scoped, tag = 'internal scratch']
  %s0 = inlined_call_operand.vmem [shape: bf16[2,4,88,4], index: 0, kind: input, shape index: {}]
  %s1 = inlined_call_operand.vmem [shape: bf16[9,4,8], index: 1, kind: input, shape index: {}]
  %s2 = inlined_call_operand.vmem [shape: f32[3,8], index: 2, kind: input, shape index: {}]
  %s3 = inlined_call_operand.vmem [shape: f32[2,8,72], index: 3, kind: output, shape index: {}]
  %s4 = sld [smem:[#allocation0]]
  $region45: #{std_conv_forward.1} parent=0
    _
  %s6 = ssub.s32 1, %s4
  %s7 = scalar_select 0, %s6, %s4
  loop: start=0, step=1, limit=4
  $region2: #{std_conv_forward.1} parent=0 // loop_pre_header
    _
  $region3: #{std_conv_forward.1} parent=0 // loop_header
    %s9 = sphi 0, %s13
    %p10 = scmp.ge.s32.totalorder %s9, 4
    %s19 = sphi 0, %s21
    %s22 = sphi 0, %s19
    %s23 = sphi 0, %s22
    %s39 = sphi 0, %s23
    %s43 = sphi 0, %s43
    %s45 = sphi 0, %s43
    %s46 = sphi 0, %s45
    %s60 = sphi 0, %s46
    %s64 = sphi 0, %s64
    %s66 = sphi 0, %s64
    %s67 = sphi 0, %s66
    %s81 = sphi 0, %s67
    %s87 = sphi 0, %s89
    %s90 = sphi 0, %s87
    %s91 = sphi 0, %s90
    %s107 = sphi 0, %s91
  $region4: #{std_conv_forward.1} parent=0 // loop_header_branch
    %12 = sbr.rel (%p10) target = $region8
  $region5: #{std_conv_forward.1} parent=0 // loop_body
    %s14 = ssub.s32 %s9, 1
    %s15 = ssub.s32 %s9, 2
    %s16 = sadd.s32 %s9, 1
    %s17 = ssub.s32 %s9, %s16
    %p18 = scmp.eq.s32.totalorder %s17, 0
    %s20 = sadd.s32 %s19, 1
    %s21 = scalar_select %p18, %s19, %s20
    %p24 = pneg %p18
    %p25 = scmp.eq.s32.totalorder %s9, 1
    %p26 = por %p24, %p25
    %p27 = scmp.ne.s32.totalorder %s19, %s22
    %p28 = scmp.eq.s32.totalorder %s9, 0
    %p29 = por %p27, %p28
    %p30 = scmp.ne.s32.totalorder %s19, %s22
    %p31 = scmp.eq.s32.totalorder %s14, 1
    %p32 = por %p30, %p31
    %p33 = scmp.ne.s32.totalorder %s22, %s23
    %p34 = scmp.eq.s32.totalorder %s14, 0
    %p35 = por %p33, %p34
    %p36 = scmp.ne.s32.totalorder %s22, %s23
    %p37 = scmp.eq.s32.totalorder %s15, 1
    %p38 = por %p36, %p37
    %p40 = scmp.ne.s32.totalorder %s23, %s39
    %p41 = scmp.eq.s32.totalorder %s15, 0
    %p42 = por %p40, %p41
    %s44 = sadd.s32 %s43, 1
    %p47 = scmp.eq.s32.totalorder %s9, 1
    %p48 = scmp.ne.s32.totalorder %s43, %s45
    %p49 = scmp.eq.s32.totalorder %s9, 0
    %p50 = por %p48, %p49
    %p51 = scmp.ne.s32.totalorder %s43, %s45
    %p52 = scmp.eq.s32.totalorder %s14, 1
    %p53 = por %p51, %p52
    %p54 = scmp.ne.s32.totalorder %s45, %s46
    %p55 = scmp.eq.s32.totalorder %s14, 0
    %p56 = por %p54, %p55
    %p57 = scmp.ne.s32.totalorder %s45, %s46
    %p58 = scmp.eq.s32.totalorder %s15, 1
    %p59 = por %p57, %p58
    %p61 = scmp.ne.s32.totalorder %s46, %s60
    %p62 = scmp.eq.s32.totalorder %s15, 0
    %p63 = por %p61, %p62
    %s65 = sadd.s32 %s64, 1
    %p68 = scmp.eq.s32.totalorder %s9, 1
    %p69 = scmp.ne.s32.totalorder %s64, %s66
    %p70 = scmp.eq.s32.totalorder %s9, 0
    %p71 = por %p69, %p70
    %p72 = scmp.ne.s32.totalorder %s64, %s66
    %p73 = scmp.eq.s32.totalorder %s14, 1
    %p74 = por %p72, %p73
    %p75 = scmp.ne.s32.totalorder %s66, %s67
    %p76 = scmp.eq.s32.totalorder %s14, 0
    %p77 = por %p75, %p76
    %p78 = scmp.ne.s32.totalorder %s66, %s67
    %p79 = scmp.eq.s32.totalorder %s15, 1
    %p80 = por %p78, %p79
    %p82 = scmp.ne.s32.totalorder %s67, %s81
    %p83 = scmp.eq.s32.totalorder %s15, 0
    %p84 = por %p82, %p83
    %s85 = ssub.s32 %s9, %s16
    %p86 = scmp.eq.s32.totalorder %s85, 0
    %s88 = sadd.s32 %s87, 1
    %s89 = scalar_select %p86, %s87, %s88
    %p92 = pneg %p86
    %p93 = scmp.eq.s32.totalorder %s9, 1
    %p94 = por %p92, %p93
    %p95 = scmp.ne.s32.totalorder %s87, %s90
    %p96 = scmp.eq.s32.totalorder %s9, 0
    %p97 = por %p95, %p96
    %p98 = scmp.ne.s32.totalorder %s87, %s90
    %p99 = scmp.eq.s32.totalorder %s14, 1
    %p100 = por %p98, %p99
    %p101 = scmp.ne.s32.totalorder %s90, %s91
    %p102 = scmp.eq.s32.totalorder %s14, 0
    %p103 = por %p101, %p102
    %p104 = scmp.ne.s32.totalorder %s90, %s91
    %p105 = scmp.eq.s32.totalorder %s15, 1
    %p106 = por %p104, %p105
    %p108 = scmp.ne.s32.totalorder %s91, %s107
    %p109 = scmp.eq.s32.totalorder %s15, 0
    %p110 = por %p108, %p109
    %p111 = scmp.le.s32.totalorder 1, %s9
    %p112 = scmp.lt.s32.totalorder %s9, 3
    %p113 = pnand %p111, %p112
    %p114 = pneg %p113
    // Predicated region
    $region9: #{std_conv_forward.1} parent=5 // pred_check
      _
    $region10: #{std_conv_forward.1} parent=5 // pred_check_branch
      %116 = sbr.rel (%p113) target = $region12
    $region11: #{std_conv_forward.1} parent=5 // pred_region
      %s117 = ssub.s32 %s9, 1
      // Predicated region
      $region13: #{std_conv_forward.1} parent=11 // pred_check
        %p118 = pneg %p56
      $region14: #{std_conv_forward.1} parent=11 // pred_check_branch
        %120 = sbr.rel (%p118) target = $region16
      $region15: #{std_conv_forward.1} parent=11 // pred_region
        _
      $region16: #{std_conv_forward.1} parent=11 // pred_fallthru
        _
      // Predicated region
      $region17: #{std_conv_forward.1} parent=11 // pred_check
        %p121 = pneg %p77
      $region18: #{std_conv_forward.1} parent=11 // pred_check_branch
        %123 = sbr.rel (%p121) target = $region20
      $region19: #{std_conv_forward.1} parent=11 // pred_region
        _
      $region20: #{std_conv_forward.1} parent=11 // pred_fallthru
        _
    $region12: #{std_conv_forward.1} parent=5 // pred_fallthru
      _
    %p124 = scmp.lt.s32.totalorder %s9, 2
    // Predicated region
    $region21: #{std_conv_forward.1} parent=5 // pred_check
      %p125 = pneg %p124
    $region22: #{std_conv_forward.1} parent=5 // pred_check_branch
      %127 = sbr.rel (%p125) target = $region24
    $region23: #{std_conv_forward.1} parent=5 // pred_region
      // Predicated region
      $region25: #{std_conv_forward.1} parent=23 // pred_check
        %p128 = pneg %p29
      $region26: #{std_conv_forward.1} parent=23 // pred_check_branch
        %130 = sbr.rel (%p128) target = $region28
      $region27: #{std_conv_forward.1} parent=23 // pred_region
        %p131 = scmp.lt.s32.totalorder %s9, 1
        %s132 = scalar_select %p131, %s9, 1
        %s133 = smul.addr %s132, 44
        %s134 = smul.addr %s133, 4
        %s135 = scalar_lea.vmem %s0, %s134
      $region28: #{std_conv_forward.1} parent=23 // pred_fallthru
        _
    $region24: #{std_conv_forward.1} parent=5 // pred_fallthru
      _
    %p136 = scmp.le.s32.totalorder 1, %s9
    %p137 = scmp.lt.s32.totalorder %s9, 3
    %p138 = pnand %p136, %p137
    %p139 = pneg %p138
    // Predicated region
    $region29: #{std_conv_forward.1} parent=5 // pred_check
      _
    $region30: #{std_conv_forward.1} parent=5 // pred_check_branch
      %141 = sbr.rel (%p138) target = $region32
    $region31: #{std_conv_forward.1} parent=5 // pred_region
      %s142 = ssub.s32 %s9, 1
      %p143 = scmp.lt.s32.totalorder %s14, 1
      %s144 = scalar_select %p143, %s14, 1
      %s145 = smul.addr %s144, 44
      %s146 = smul.addr %s145, 4
      %s147 = scalar_lea.vmem %s0, %s146
      %p148 = pneg %p35
      %p149 = pneg %p32
      %p150 = pneg %p56
      %p151 = pneg %p53
      %p152 = pneg %p77
      %p153 = pneg %p74
      %p154 = pneg %p103
      %p155 = pneg %p100
      %p156 = scmp.lt.s32.totalorder %s14, 1
      %s157 = scalar_select %p156, %s14, 1
      %s158 = smul.addr %s157, 8
      %s159 = scalar_lea.vmem %s3, %s158
      %p160 = scmp.lt.s32.totalorder %s14, 1
      %s161 = scalar_select %p160, %s14, 1
      %s162 = smul.addr %s161, 44
      %s163 = smul.addr %s162, 4
      %s164 = scalar_lea.vmem %s0, %s163
      %p165 = scmp.lt.s32.totalorder %s14, 1
      %s166 = scalar_select %p165, %s14, 1
      %s167 = smul.addr %s166, 8
      %s168 = scalar_lea.vmem %s3, %s167
      %v170 = vld [vmem:[%s164] sm:$0xf]
      %v171 = vld [vmem:[%s164 + $0x4] sm:$0xf]
      %v172 = vld [vmem:[%s164 + $0x8] sm:$0xf]
      %v173 = vld [vmem:[%s164 + $0xc] sm:$0xf]
      %v174 = vld [vmem:[%s164 + $0x10] sm:$0xf]
      %v175 = vld [vmem:[%s164 + $0x14] sm:$0xf]
      %v176 = vld [vmem:[%s164 + $0x18] sm:$0xf]
      %v177 = vld [vmem:[%s164 + $0x1c] sm:$0xf]
      %v178 = vld [vmem:[%s164 + $0x20] sm:$0xf]
      %v179 = vld [vmem:[%s1] sm:$0x3]
      %s180 = scalar_lea.vmem %s164, 44
      %v181 = vld [vmem:[%s180] sm:$0xf]
      %v182 = vld [vmem:[%s180 + $0x4] sm:$0xf]
      %v183 = vld [vmem:[%s180 + $0x8] sm:$0xf]
      %v184 = vld [vmem:[%s180 + $0xc] sm:$0xf]
      %v185 = vld [vmem:[%s180 + $0x10] sm:$0xf]
      %v186 = vld [vmem:[%s180 + $0x14] sm:$0xf]
      %v187 = vld [vmem:[%s180 + $0x18] sm:$0xf]
      %v188 = vld [vmem:[%s180 + $0x1c] sm:$0xf]
      %v189 = vld [vmem:[%s180 + $0x20] sm:$0xf]
      %s190 = scalar_lea.vmem %s1, 2
      %v191 = vld [vmem:[%s190] sm:$0x3]
      %v201 = vunpack.c.l.b16 %v181
      %v202 = vunpack.c.l.b16 %v182
      %v203 = vunpack.c.l.b16 %v183
      %v204 = vunpack.c.l.b16 %v184
      %v205 = vunpack.c.l.b16 %v185
      %v206 = vunpack.c.l.b16 %v186
      %v207 = vunpack.c.l.b16 %v187
      %v208 = vunpack.c.l.b16 %v188
      %v209 = vunpack.c.l.b16 %v189
      %v210 = vpack.c.b16 %v202, %v201
      %v211 = vpack.c.b16 %v204, %v203
      %v212 = vpack.c.b16 %v206, %v205
      %v213 = vpack.c.b16 %v208, %v207
      %v214 = vpack.c.b16 %v209, %v209
      %vm215 = vcmask 31744
      %v217 = vsel %vm215, %v210, 0
      %v220 = vsel %vm215, %v211, 0
      %v223 = vsel %vm215, %v212, 0
      %v226 = vsel %vm215, %v213, 0
      %v229 = vsel %vm215, %v214, 0
      %vm231 = vcmask 1041408
      %v233 = vsel %vm231, %v191, 0
      %235 = vmatpush.bf16.msra.mxu0 0
      %236 = vmatpush.bf16.msra.mxu0 0
      %237 = vmatpush.bf16.msra.mxu0 0
      %238 = vmatpush.bf16.msra.mxu0 0
      %239 = vmatpush.bf16.msra.mxu0 0
      %240 = vmatpush.bf16.msra.mxu0 0
      %241 = vmatpush.bf16.msra.mxu0 0
      %242 = vmatpush.bf16.msra.mxu0 %v233
      %243 = vmatmul.bf16.gmra.mxu0 %v217
      %v244 = vpop.f32.mrf.mxu0
      %v245 = vadd.f32 0.0, %v244
      %v246 = vpop.f32.mrf.mxu0
      %v247 = vadd.f32 0.0, %v246
      %248 = vmatmul.bf16.gmra.mxu0 %v220
      %v249 = vpop.f32.mrf.mxu0
      %v250 = vadd.f32 0.0, %v249
      %v251 = vpop.f32.mrf.mxu0
      %v252 = vadd.f32 0.0, %v251
      %253 = vmatmul.bf16.gmra.mxu0 %v223
      %v254 = vpop.f32.mrf.mxu0
      %v255 = vadd.f32 0.0, %v254
      %v256 = vpop.f32.mrf.mxu0
      %v257 = vadd.f32 0.0, %v256
      %258 = vmatmul.bf16.gmra.mxu0 %v226
      %v259 = vpop.f32.mrf.mxu0
      %v260 = vadd.f32 0.0, %v259
      %v261 = vpop.f32.mrf.mxu0
      %v262 = vadd.f32 0.0, %v261
      %263 = vmatmul.bf16.gmra.mxu0 %v229
      %v264 = vpop.f32.mrf.mxu0
      %v265 = vadd.f32 0.0, %v264
      %v266 = vpop.f32.mrf.mxu0
      %267 = vdwg.mxu0
      %v277 = vunpack.c.l.b16 %v170
      %v278 = vunpack.c.l.b16 %v171
      %v279 = vunpack.c.l.b16 %v172
      %v280 = vunpack.c.l.b16 %v173
      %v281 = vunpack.c.l.b16 %v174
      %v282 = vunpack.c.l.b16 %v175
      %v283 = vunpack.c.l.b16 %v176
      %v284 = vunpack.c.l.b16 %v177
      %v285 = vunpack.c.l.b16 %v178
      %v286 = vpack.c.b16 %v278, %v277
      %v287 = vpack.c.b16 %v280, %v279
      %v288 = vpack.c.b16 %v282, %v281
      %v289 = vpack.c.b16 %v284, %v283
      %v290 = vpack.c.b16 %v285, %v285
      %v292 = vsel %vm215, %v286, 0
      %v295 = vsel %vm215, %v287, 0
      %v298 = vsel %vm215, %v288, 0
      %v301 = vsel %vm215, %v289, 0
      %v304 = vsel %vm215, %v290, 0
      %v307 = vsel %vm231, %v179, 0
      %309 = vmatpush.bf16.msra.mxu0 0
      %310 = vmatpush.bf16.msra.mxu0 0
      %311 = vmatpush.bf16.msra.mxu0 0
      %312 = vmatpush.bf16.msra.mxu0 0
      %313 = vmatpush.bf16.msra.mxu0 0
      %314 = vmatpush.bf16.msra.mxu0 0
      %315 = vmatpush.bf16.msra.mxu0 0
      %316 = vmatpush.bf16.msra.mxu0 %v307
      %317 = vmatmul.bf16.gmra.mxu0 %v292
      %v318 = vpop.f32.mrf.mxu0
      %v319 = vadd.f32 %v245, %v318
      %v320 = vpop.f32.mrf.mxu0
      %v321 = vadd.f32 %v247, %v320
      %322 = vmatmul.bf16.gmra.mxu0 %v295
      %v323 = vpop.f32.mrf.mxu0
      %v324 = vadd.f32 %v250, %v323
      %v325 = vpop.f32.mrf.mxu0
      %v326 = vadd.f32 %v252, %v325
      %327 = vmatmul.bf16.gmra.mxu0 %v298
      %v328 = vpop.f32.mrf.mxu0
      %v329 = vadd.f32 %v255, %v328
      %v330 = vpop.f32.mrf.mxu0
      %v331 = vadd.f32 %v257, %v330
      %332 = vmatmul.bf16.gmra.mxu0 %v301
      %v333 = vpop.f32.mrf.mxu0
      %v334 = vadd.f32 %v260, %v333
      %v335 = vpop.f32.mrf.mxu0
      %v336 = vadd.f32 %v262, %v335
      %337 = vmatmul.bf16.gmra.mxu0 %v304
      %v338 = vpop.f32.mrf.mxu0
      %v339 = vadd.f32 %v265, %v338
      %v340 = vpop.f32.mrf.mxu0
      %341 = vdwg.mxu0
      %v342 = vld [vmem:[%s164] sm:$0xf]
      %v343 = vld [vmem:[%s164 + $0x4] sm:$0xf]
      %v344 = vld [vmem:[%s164 + $0x8] sm:$0xf]
      %v345 = vld [vmem:[%s164 + $0xc] sm:$0xf]
      %v346 = vld [vmem:[%s164 + $0x10] sm:$0xf]
      %v347 = vld [vmem:[%s164 + $0x14] sm:$0xf]
      %v348 = vld [vmem:[%s164 + $0x18] sm:$0xf]
      %v349 = vld [vmem:[%s164 + $0x1c] sm:$0xf]
      %v350 = vld [vmem:[%s164 + $0x20] sm:$0xf]
      %v351 = vld [vmem:[%s164 + $0x24] sm:$0x1]
      %s352 = scalar_lea.vmem %s1, 4
      %v353 = vld [vmem:[%s352] sm:$0x3]
      %v364 = vunpack.c.l.b16 %v342
      %v365 = vunpack.c.l.b16 %v343
      %v366 = vunpack.c.l.b16 %v344
      %v367 = vunpack.c.l.b16 %v345
      %v368 = vunpack.c.l.b16 %v346
      %v369 = vunpack.c.l.b16 %v347
      %v370 = vunpack.c.l.b16 %v348
      %v371 = vunpack.c.l.b16 %v349
      %v372 = vunpack.c.l.b16 %v350
      %v373 = vunpack.c.l.b16 %v351
      %v374 = vpack.c.b16 %v365, %v364
      %v375 = vpack.c.b16 %v367, %v366
      %v376 = vpack.c.b16 %v369, %v368
      %v377 = vpack.c.b16 %v371, %v370
      %v378 = vpack.c.b16 %v373, %v372
      %vm379 = vsmask.f32 7424
      %v381 = vshrl.u32 %v374, 16
      %v383 = vshll.u32 %v374, 16
      %v385 = vrot.slane %v383, 1
      %v386 = vor.u32 %v381, %v385
      %v388 = vshll.u32 %v375, 16
      %v390 = vrot.slane %v388, 1
      %v391 = vsel %vm379, %v386, %v390
      %v392 = vshrl.u32 %v375, 16
      %v394 = vor.u32 %v392, %v390
      %v396 = vshll.u32 %v376, 16
      %v398 = vrot.slane %v396, 1
      %v399 = vsel %vm379, %v394, %v398
      %v400 = vshrl.u32 %v376, 16
      %v402 = vor.u32 %v400, %v398
      %v404 = vshll.u32 %v377, 16
      %v406 = vrot.slane %v404, 1
      %v407 = vsel %vm379, %v402, %v406
      %v408 = vshrl.u32 %v377, 16
      %v410 = vor.u32 %v408, %v406
      %v412 = vshll.u32 %v378, 16
      %v414 = vrot.slane %v412, 1
      %v415 = vsel %vm379, %v410, %v414
      %v416 = vshrl.u32 %v378, 16
      %v418 = vor.u32 %v416, %v414
      %v420 = vsel %vm215, %v391, 0
      %v423 = vsel %vm215, %v399, 0
      %v426 = vsel %vm215, %v407, 0
      %v429 = vsel %vm215, %v415, 0
      %v432 = vsel %vm215, %v418, 0
      %v435 = vsel %vm231, %v353, 0
      %437 = vmatpush.bf16.msra.mxu0 0
      %438 = vmatpush.bf16.msra.mxu0 0
      %439 = vmatpush.bf16.msra.mxu0 0
      %440 = vmatpush.bf16.msra.mxu0 0
      %441 = vmatpush.bf16.msra.mxu0 0
      %442 = vmatpush.bf16.msra.mxu0 0
      %443 = vmatpush.bf16.msra.mxu0 0
      %444 = vmatpush.bf16.msra.mxu0 %v435
      %445 = vmatmul.bf16.gmra.mxu0 %v420
      %v446 = vpop.f32.mrf.mxu0
      %v447 = vadd.f32 0.0, %v446
      %v448 = vpop.f32.mrf.mxu0
      %v449 = vadd.f32 0.0, %v448
      %450 = vmatmul.bf16.gmra.mxu0 %v423
      %v451 = vpop.f32.mrf.mxu0
      %v452 = vadd.f32 0.0, %v451
      %v453 = vpop.f32.mrf.mxu0
      %v454 = vadd.f32 0.0, %v453
      %455 = vmatmul.bf16.gmra.mxu0 %v426
      %v456 = vpop.f32.mrf.mxu0
      %v457 = vadd.f32 0.0, %v456
      %v458 = vpop.f32.mrf.mxu0
      %v459 = vadd.f32 0.0, %v458
      %460 = vmatmul.bf16.gmra.mxu0 %v429
      %v461 = vpop.f32.mrf.mxu0
      %v462 = vadd.f32 0.0, %v461
      %v463 = vpop.f32.mrf.mxu0
      %v464 = vadd.f32 0.0, %v463
      %465 = vmatmul.bf16.gmra.mxu0 %v432
      %v466 = vpop.f32.mrf.mxu0
      %v467 = vadd.f32 0.0, %v466
      %v468 = vpop.f32.mrf.mxu0
      %469 = vdwg.mxu0
      %v470 = vadd.f32 %v319, %v447
      %v471 = vadd.f32 %v321, %v449
      %v472 = vadd.f32 %v324, %v452
      %v473 = vadd.f32 %v326, %v454
      %v474 = vadd.f32 %v329, %v457
      %v475 = vadd.f32 %v331, %v459
      %v476 = vadd.f32 %v334, %v462
      %v477 = vadd.f32 %v336, %v464
      %v478 = vadd.f32 %v339, %v467
      %s479 = scalar_lea.vmem %s164, 88
      %v480 = vld [vmem:[%s479] sm:$0xf]
      %v481 = vld [vmem:[%s479 + $0x4] sm:$0xf]
      %v482 = vld [vmem:[%s479 + $0x8] sm:$0xf]
      %v483 = vld [vmem:[%s479 + $0xc] sm:$0xf]
      %v484 = vld [vmem:[%s479 + $0x10] sm:$0xf]
      %v485 = vld [vmem:[%s479 + $0x14] sm:$0xf]
      %v486 = vld [vmem:[%s479 + $0x18] sm:$0xf]
      %v487 = vld [vmem:[%s479 + $0x1c] sm:$0xf]
      %v488 = vld [vmem:[%s479 + $0x20] sm:$0xf]
      %s489 = scalar_lea.vmem %s1, 6
      %v490 = vld [vmem:[%s489] sm:$0x3]
      %v500 = vunpack.c.l.b16 %v480
      %v501 = vunpack.c.l.b16 %v481
      %v502 = vunpack.c.l.b16 %v482
      %v503 = vunpack.c.l.b16 %v483
      %v504 = vunpack.c.l.b16 %v484
      %v505 = vunpack.c.l.b16 %v485
      %v506 = vunpack.c.l.b16 %v486
      %v507 = vunpack.c.l.b16 %v487
      %v508 = vunpack.c.l.b16 %v488
      %v509 = vpack.c.b16 %v501, %v500
      %v510 = vpack.c.b16 %v503, %v502
      %v511 = vpack.c.b16 %v505, %v504
      %v512 = vpack.c.b16 %v507, %v506
      %v513 = vpack.c.b16 %v508, %v508
      %v515 = vsel %vm215, %v509, 0
      %v518 = vsel %vm215, %v510, 0
      %v521 = vsel %vm215, %v511, 0
      %v524 = vsel %vm215, %v512, 0
      %v527 = vsel %vm215, %v513, 0
      %v530 = vsel %vm231, %v490, 0
      %532 = vmatpush.bf16.msra.mxu0 0
      %533 = vmatpush.bf16.msra.mxu0 0
      %534 = vmatpush.bf16.msra.mxu0 0
      %535 = vmatpush.bf16.msra.mxu0 0
      %536 = vmatpush.bf16.msra.mxu0 0
      %537 = vmatpush.bf16.msra.mxu0 0
      %538 = vmatpush.bf16.msra.mxu0 0
      %539 = vmatpush.bf16.msra.mxu0 %v530
      %540 = vmatmul.bf16.gmra.mxu0 %v515
      %v541 = vpop.f32.mrf.mxu0
      %v542 = vadd.f32 0.0, %v541
      %v543 = vpop.f32.mrf.mxu0
      %v544 = vadd.f32 0.0, %v543
      %545 = vmatmul.bf16.gmra.mxu0 %v518
      %v546 = vpop.f32.mrf.mxu0
      %v547 = vadd.f32 0.0, %v546
      %v548 = vpop.f32.mrf.mxu0
      %v549 = vadd.f32 0.0, %v548
      %550 = vmatmul.bf16.gmra.mxu0 %v521
      %v551 = vpop.f32.mrf.mxu0
      %v552 = vadd.f32 0.0, %v551
      %v553 = vpop.f32.mrf.mxu0
      %v554 = vadd.f32 0.0, %v553
      %555 = vmatmul.bf16.gmra.mxu0 %v524
      %v556 = vpop.f32.mrf.mxu0
      %v557 = vadd.f32 0.0, %v556
      %v558 = vpop.f32.mrf.mxu0
      %v559 = vadd.f32 0.0, %v558
      %560 = vmatmul.bf16.gmra.mxu0 %v527
      %v561 = vpop.f32.mrf.mxu0
      %v562 = vadd.f32 0.0, %v561
      %v563 = vpop.f32.mrf.mxu0
      %564 = vdwg.mxu0
      %v565 = vadd.f32 %v470, %v542
      %v566 = vadd.f32 %v471, %v544
      %v567 = vadd.f32 %v472, %v547
      %v568 = vadd.f32 %v473, %v549
      %v569 = vadd.f32 %v474, %v552
      %v570 = vadd.f32 %v475, %v554
      %v571 = vadd.f32 %v476, %v557
      %v572 = vadd.f32 %v477, %v559
      %v573 = vadd.f32 %v478, %v562
      %s574 = scalar_lea.vmem %s164, 132
      %v575 = vld [vmem:[%s574] sm:$0xf]
      %v576 = vld [vmem:[%s574 + $0x4] sm:$0xf]
      %v577 = vld [vmem:[%s574 + $0x8] sm:$0xf]
      %v578 = vld [vmem:[%s574 + $0xc] sm:$0xf]
      %v579 = vld [vmem:[%s574 + $0x10] sm:$0xf]
      %v580 = vld [vmem:[%s574 + $0x14] sm:$0xf]
      %v581 = vld [vmem:[%s574 + $0x18] sm:$0xf]
      %v582 = vld [vmem:[%s574 + $0x1c] sm:$0xf]
      %v583 = vld [vmem:[%s574 + $0x20] sm:$0xf]
      %s584 = scalar_lea.vmem %s1, 8
      %v585 = vld [vmem:[%s584] sm:$0x3]
      %v595 = vunpack.c.l.b16 %v575
      %v596 = vunpack.c.l.b16 %v576
      %v597 = vunpack.c.l.b16 %v577
      %v598 = vunpack.c.l.b16 %v578
      %v599 = vunpack.c.l.b16 %v579
      %v600 = vunpack.c.l.b16 %v580
      %v601 = vunpack.c.l.b16 %v581
      %v602 = vunpack.c.l.b16 %v582
      %v603 = vunpack.c.l.b16 %v583
      %v604 = vpack.c.b16 %v596, %v595
      %v605 = vpack.c.b16 %v598, %v597
      %v606 = vpack.c.b16 %v600, %v599
      %v607 = vpack.c.b16 %v602, %v601
      %v608 = vpack.c.b16 %v603, %v603
      %v610 = vsel %vm215, %v604, 0
      %v613 = vsel %vm215, %v605, 0
      %v616 = vsel %vm215, %v606, 0
      %v619 = vsel %vm215, %v607, 0
      %v622 = vsel %vm215, %v608, 0
      %v625 = vsel %vm231, %v585, 0
      %627 = vmatpush.bf16.msra.mxu0 0
      %628 = vmatpush.bf16.msra.mxu0 0
      %629 = vmatpush.bf16.msra.mxu0 0
      %630 = vmatpush.bf16.msra.mxu0 0
      %631 = vmatpush.bf16.msra.mxu0 0
      %632 = vmatpush.bf16.msra.mxu0 0
      %633 = vmatpush.bf16.msra.mxu0 0
      %634 = vmatpush.bf16.msra.mxu0 %v625
      %635 = vmatmul.bf16.gmra.mxu0 %v610
      %v636 = vpop.f32.mrf.mxu0
      %v637 = vadd.f32 0.0, %v636
      %v638 = vpop.f32.mrf.mxu0
      %v639 = vadd.f32 0.0, %v638
      %640 = vmatmul.bf16.gmra.mxu0 %v613
      %v641 = vpop.f32.mrf.mxu0
      %v642 = vadd.f32 0.0, %v641
      %v643 = vpop.f32.mrf.mxu0
      %v644 = vadd.f32 0.0, %v643
      %645 = vmatmul.bf16.gmra.mxu0 %v616
      %v646 = vpop.f32.mrf.mxu0
      %v647 = vadd.f32 0.0, %v646
      %v648 = vpop.f32.mrf.mxu0
      %v649 = vadd.f32 0.0, %v648
      %650 = vmatmul.bf16.gmra.mxu0 %v619
      %v651 = vpop.f32.mrf.mxu0
      %v652 = vadd.f32 0.0, %v651
      %v653 = vpop.f32.mrf.mxu0
      %v654 = vadd.f32 0.0, %v653
      %655 = vmatmul.bf16.gmra.mxu0 %v622
      %v656 = vpop.f32.mrf.mxu0
      %v657 = vadd.f32 0.0, %v656
      %v658 = vpop.f32.mrf.mxu0
      %659 = vdwg.mxu0
      %v660 = vadd.f32 %v565, %v637
      %v661 = vadd.f32 %v566, %v639
      %v662 = vadd.f32 %v567, %v642
      %v663 = vadd.f32 %v568, %v644
      %v664 = vadd.f32 %v569, %v647
      %v665 = vadd.f32 %v570, %v649
      %v666 = vadd.f32 %v571, %v652
      %v667 = vadd.f32 %v572, %v654
      %v668 = vadd.f32 %v573, %v657
      %v669 = vld [vmem:[%s479] sm:$0xf]
      %v670 = vld [vmem:[%s479 + $0x4] sm:$0xf]
      %v671 = vld [vmem:[%s479 + $0x8] sm:$0xf]
      %v672 = vld [vmem:[%s479 + $0xc] sm:$0xf]
      %v673 = vld [vmem:[%s479 + $0x10] sm:$0xf]
      %v674 = vld [vmem:[%s479 + $0x14] sm:$0xf]
      %v675 = vld [vmem:[%s479 + $0x18] sm:$0xf]
      %v676 = vld [vmem:[%s479 + $0x1c] sm:$0xf]
      %v677 = vld [vmem:[%s479 + $0x20] sm:$0xf]
      %v678 = vld [vmem:[%s479 + $0x24] sm:$0x1]
      %s679 = scalar_lea.vmem %s1, 10
      %v680 = vld [vmem:[%s679] sm:$0x3]
      %v691 = vunpack.c.l.b16 %v669
      %v692 = vunpack.c.l.b16 %v670
      %v693 = vunpack.c.l.b16 %v671
      %v694 = vunpack.c.l.b16 %v672
      %v695 = vunpack.c.l.b16 %v673
      %v696 = vunpack.c.l.b16 %v674
      %v697 = vunpack.c.l.b16 %v675
      %v698 = vunpack.c.l.b16 %v676
      %v699 = vunpack.c.l.b16 %v677
      %v700 = vunpack.c.l.b16 %v678
      %v701 = vpack.c.b16 %v692, %v691
      %v702 = vpack.c.b16 %v694, %v693
      %v703 = vpack.c.b16 %v696, %v695
      %v704 = vpack.c.b16 %v698, %v697
      %v705 = vpack.c.b16 %v700, %v699
      %v707 = vshrl.u32 %v701, 16
      %v709 = vshll.u32 %v701, 16
      %v711 = vrot.slane %v709, 1
      %v712 = vor.u32 %v707, %v711
      %v714 = vshll.u32 %v702, 16
      %v716 = vrot.slane %v714, 1
      %v717 = vsel %vm379, %v712, %v716
      %v718 = vshrl.u32 %v702, 16
      %v720 = vor.u32 %v718, %v716
      %v722 = vshll.u32 %v703, 16
      %v724 = vrot.slane %v722, 1
      %v725 = vsel %vm379, %v720, %v724
      %v726 = vshrl.u32 %v703, 16
      %v728 = vor.u32 %v726, %v724
      %v730 = vshll.u32 %v704, 16
      %v732 = vrot.slane %v730, 1
      %v733 = vsel %vm379, %v728, %v732
      %v734 = vshrl.u32 %v704, 16
      %v736 = vor.u32 %v734, %v732
      %v738 = vshll.u32 %v705, 16
      %v740 = vrot.slane %v738, 1
      %v741 = vsel %vm379, %v736, %v740
      %v742 = vshrl.u32 %v705, 16
      %v744 = vor.u32 %v742, %v740
      %v746 = vsel %vm215, %v717, 0
      %v749 = vsel %vm215, %v725, 0
      %v752 = vsel %vm215, %v733, 0
      %v755 = vsel %vm215, %v741, 0
      %v758 = vsel %vm215, %v744, 0
      %v761 = vsel %vm231, %v680, 0
      %763 = vmatpush.bf16.msra.mxu0 0
      %764 = vmatpush.bf16.msra.mxu0 0
      %765 = vmatpush.bf16.msra.mxu0 0
      %766 = vmatpush.bf16.msra.mxu0 0
      %767 = vmatpush.bf16.msra.mxu0 0
      %768 = vmatpush.bf16.msra.mxu0 0
      %769 = vmatpush.bf16.msra.mxu0 0
      %770 = vmatpush.bf16.msra.mxu0 %v761
      %771 = vmatmul.bf16.gmra.mxu0 %v746
      %v772 = vpop.f32.mrf.mxu0
      %v773 = vadd.f32 0.0, %v772
      %v774 = vpop.f32.mrf.mxu0
      %v775 = vadd.f32 0.0, %v774
      %776 = vmatmul.bf16.gmra.mxu0 %v749
      %v777 = vpop.f32.mrf.mxu0
      %v778 = vadd.f32 0.0, %v777
      %v779 = vpop.f32.mrf.mxu0
      %v780 = vadd.f32 0.0, %v779
      %781 = vmatmul.bf16.gmra.mxu0 %v752
      %v782 = vpop.f32.mrf.mxu0
      %v783 = vadd.f32 0.0, %v782
      %v784 = vpop.f32.mrf.mxu0
      %v785 = vadd.f32 0.0, %v784
      %786 = vmatmul.bf16.gmra.mxu0 %v755
      %v787 = vpop.f32.mrf.mxu0
      %v788 = vadd.f32 0.0, %v787
      %v789 = vpop.f32.mrf.mxu0
      %v790 = vadd.f32 0.0, %v789
      %791 = vmatmul.bf16.gmra.mxu0 %v758
      %v792 = vpop.f32.mrf.mxu0
      %v793 = vadd.f32 0.0, %v792
      %v794 = vpop.f32.mrf.mxu0
      %795 = vdwg.mxu0
      %v796 = vadd.f32 %v660, %v773
      %v797 = vadd.f32 %v661, %v775
      %v798 = vadd.f32 %v662, %v778
      %v799 = vadd.f32 %v663, %v780
      %v800 = vadd.f32 %v664, %v783
      %v801 = vadd.f32 %v665, %v785
      %v802 = vadd.f32 %v666, %v788
      %v803 = vadd.f32 %v667, %v790
      %v804 = vadd.f32 %v668, %v793
      %v805 = vld [vmem:[%s164 + $0x4] sm:$0xf]
      %v806 = vld [vmem:[%s164 + $0x8] sm:$0xf]
      %v807 = vld [vmem:[%s164 + $0xc] sm:$0xf]
      %v808 = vld [vmem:[%s164 + $0x10] sm:$0xf]
      %v809 = vld [vmem:[%s164 + $0x14] sm:$0xf]
      %v810 = vld [vmem:[%s164 + $0x18] sm:$0xf]
      %v811 = vld [vmem:[%s164 + $0x1c] sm:$0xf]
      %v812 = vld [vmem:[%s164 + $0x20] sm:$0xf]
      %v813 = vld [vmem:[%s164 + $0x24] sm:$0xf]
      %v814 = vld [vmem:[%s164 + $0x28] sm:$0x1]
      %s815 = scalar_lea.vmem %s1, 12
      %v816 = vld [vmem:[%s815] sm:$0x3]
      %v827 = vunpack.c.l.b16 %v805
      %v828 = vunpack.c.l.b16 %v806
      %v829 = vunpack.c.l.b16 %v807
      %v830 = vunpack.c.l.b16 %v808
      %v831 = vunpack.c.l.b16 %v809
      %v832 = vunpack.c.l.b16 %v810
      %v833 = vunpack.c.l.b16 %v811
      %v834 = vunpack.c.l.b16 %v812
      %v835 = vunpack.c.l.b16 %v813
      %v836 = vunpack.c.l.b16 %v814
      %v837 = vpack.c.b16 %v828, %v827
      %v838 = vpack.c.b16 %v830, %v829
      %v839 = vpack.c.b16 %v832, %v831
      %v840 = vpack.c.b16 %v834, %v833
      %v841 = vpack.c.b16 %v836, %v835
      %v843 = vshrl.u32 %v837, 16
      %v845 = vshll.u32 %v837, 16
      %v847 = vrot.slane %v845, 1
      %v848 = vor.u32 %v843, %v847
      %v850 = vshll.u32 %v838, 16
      %v852 = vrot.slane %v850, 1
      %v853 = vsel %vm379, %v848, %v852
      %v854 = vshrl.u32 %v838, 16
      %v856 = vor.u32 %v854, %v852
      %v858 = vshll.u32 %v839, 16
      %v860 = vrot.slane %v858, 1
      %v861 = vsel %vm379, %v856, %v860
      %v862 = vshrl.u32 %v839, 16
      %v864 = vor.u32 %v862, %v860
      %v866 = vshll.u32 %v840, 16
      %v868 = vrot.slane %v866, 1
      %v869 = vsel %vm379, %v864, %v868
      %v870 = vshrl.u32 %v840, 16
      %v872 = vor.u32 %v870, %v868
      %v874 = vshll.u32 %v841, 16
      %v876 = vrot.slane %v874, 1
      %v877 = vsel %vm379, %v872, %v876
      %v878 = vshrl.u32 %v841, 16
      %v880 = vor.u32 %v878, %v876
      %v882 = vsel %vm215, %v853, 0
      %v885 = vsel %vm215, %v861, 0
      %v888 = vsel %vm215, %v869, 0
      %v891 = vsel %vm215, %v877, 0
      %v894 = vsel %vm215, %v880, 0
      %v897 = vsel %vm231, %v816, 0
      %899 = vmatpush.bf16.msra.mxu0 0
      %900 = vmatpush.bf16.msra.mxu0 0
      %901 = vmatpush.bf16.msra.mxu0 0
      %902 = vmatpush.bf16.msra.mxu0 0
      %903 = vmatpush.bf16.msra.mxu0 0
      %904 = vmatpush.bf16.msra.mxu0 0
      %905 = vmatpush.bf16.msra.mxu0 0
      %906 = vmatpush.bf16.msra.mxu0 %v897
      %907 = vmatmul.bf16.gmra.mxu0 %v882
      %v908 = vpop.f32.mrf.mxu0
      %v909 = vadd.f32 0.0, %v908
      %v910 = vpop.f32.mrf.mxu0
      %v911 = vadd.f32 0.0, %v910
      %912 = vmatmul.bf16.gmra.mxu0 %v885
      %v913 = vpop.f32.mrf.mxu0
      %v914 = vadd.f32 0.0, %v913
      %v915 = vpop.f32.mrf.mxu0
      %v916 = vadd.f32 0.0, %v915
      %917 = vmatmul.bf16.gmra.mxu0 %v888
      %v918 = vpop.f32.mrf.mxu0
      %v919 = vadd.f32 0.0, %v918
      %v920 = vpop.f32.mrf.mxu0
      %v921 = vadd.f32 0.0, %v920
      %922 = vmatmul.bf16.gmra.mxu0 %v891
      %v923 = vpop.f32.mrf.mxu0
      %v924 = vadd.f32 0.0, %v923
      %v925 = vpop.f32.mrf.mxu0
      %v926 = vadd.f32 0.0, %v925
      %927 = vmatmul.bf16.gmra.mxu0 %v894
      %v928 = vpop.f32.mrf.mxu0
      %v929 = vadd.f32 0.0, %v928
      %v930 = vpop.f32.mrf.mxu0
      %931 = vdwg.mxu0
      %v932 = vadd.f32 %v796, %v909
      %v933 = vadd.f32 %v797, %v911
      %v934 = vadd.f32 %v798, %v914
      %v935 = vadd.f32 %v799, %v916
      %v936 = vadd.f32 %v800, %v919
      %v937 = vadd.f32 %v801, %v921
      %v938 = vadd.f32 %v802, %v924
      %v939 = vadd.f32 %v803, %v926
      %v940 = vadd.f32 %v804, %v929
      %v941 = vld [vmem:[%s180 + $0x4] sm:$0xf]
      %v942 = vld [vmem:[%s180 + $0x8] sm:$0xf]
      %v943 = vld [vmem:[%s180 + $0xc] sm:$0xf]
      %v944 = vld [vmem:[%s180 + $0x10] sm:$0xf]
      %v945 = vld [vmem:[%s180 + $0x14] sm:$0xf]
      %v946 = vld [vmem:[%s180 + $0x18] sm:$0xf]
      %v947 = vld [vmem:[%s180 + $0x1c] sm:$0xf]
      %v948 = vld [vmem:[%s180 + $0x20] sm:$0xf]
      %v949 = vld [vmem:[%s180 + $0x24] sm:$0xf]
      %v950 = vld [vmem:[%s180 + $0x28] sm:$0x1]
      %s951 = scalar_lea.vmem %s1, 14
      %v952 = vld [vmem:[%s951] sm:$0x3]
      %v963 = vunpack.c.l.b16 %v941
      %v964 = vunpack.c.l.b16 %v942
      %v965 = vunpack.c.l.b16 %v943
      %v966 = vunpack.c.l.b16 %v944
      %v967 = vunpack.c.l.b16 %v945
      %v968 = vunpack.c.l.b16 %v946
      %v969 = vunpack.c.l.b16 %v947
      %v970 = vunpack.c.l.b16 %v948
      %v971 = vunpack.c.l.b16 %v949
      %v972 = vunpack.c.l.b16 %v950
      %v973 = vpack.c.b16 %v964, %v963
      %v974 = vpack.c.b16 %v966, %v965
      %v975 = vpack.c.b16 %v968, %v967
      %v976 = vpack.c.b16 %v970, %v969
      %v977 = vpack.c.b16 %v972, %v971
      %v979 = vshrl.u32 %v973, 16
      %v981 = vshll.u32 %v973, 16
      %v983 = vrot.slane %v981, 1
      %v984 = vor.u32 %v979, %v983
      %v986 = vshll.u32 %v974, 16
      %v988 = vrot.slane %v986, 1
      %v989 = vsel %vm379, %v984, %v988
      %v990 = vshrl.u32 %v974, 16
      %v992 = vor.u32 %v990, %v988
      %v994 = vshll.u32 %v975, 16
      %v996 = vrot.slane %v994, 1
      %v997 = vsel %vm379, %v992, %v996
      %v998 = vshrl.u32 %v975, 16
      %v1000 = vor.u32 %v998, %v996
      %v1002 = vshll.u32 %v976, 16
      %v1004 = vrot.slane %v1002, 1
      %v1005 = vsel %vm379, %v1000, %v1004
      %v1006 = vshrl.u32 %v976, 16
      %v1008 = vor.u32 %v1006, %v1004
      %v1010 = vshll.u32 %v977, 16
      %v1012 = vrot.slane %v1010, 1
      %v1013 = vsel %vm379, %v1008, %v1012
      %v1014 = vshrl.u32 %v977, 16
      %v1016 = vor.u32 %v1014, %v1012
      %v1018 = vsel %vm215, %v989, 0
      %v1021 = vsel %vm215, %v997, 0
      %v1024 = vsel %vm215, %v1005, 0
      %v1027 = vsel %vm215, %v1013, 0
      %v1030 = vsel %vm215, %v1016, 0
      %v1033 = vsel %vm231, %v952, 0
      %1035 = vmatpush.bf16.msra.mxu0 0
      %1036 = vmatpush.bf16.msra.mxu0 0
      %1037 = vmatpush.bf16.msra.mxu0 0
      %1038 = vmatpush.bf16.msra.mxu0 0
      %1039 = vmatpush.bf16.msra.mxu0 0
      %1040 = vmatpush.bf16.msra.mxu0 0
      %1041 = vmatpush.bf16.msra.mxu0 0
      %1042 = vmatpush.bf16.msra.mxu0 %v1033
      %1043 = vmatmul.bf16.gmra.mxu0 %v1018
      %v1044 = vpop.f32.mrf.mxu0
      %v1045 = vadd.f32 0.0, %v1044
      %v1046 = vpop.f32.mrf.mxu0
      %v1047 = vadd.f32 0.0, %v1046
      %1048 = vmatmul.bf16.gmra.mxu0 %v1021
      %v1049 = vpop.f32.mrf.mxu0
      %v1050 = vadd.f32 0.0, %v1049
      %v1051 = vpop.f32.mrf.mxu0
      %v1052 = vadd.f32 0.0, %v1051
      %1053 = vmatmul.bf16.gmra.mxu0 %v1024
      %v1054 = vpop.f32.mrf.mxu0
      %v1055 = vadd.f32 0.0, %v1054
      %v1056 = vpop.f32.mrf.mxu0
      %v1057 = vadd.f32 0.0, %v1056
      %1058 = vmatmul.bf16.gmra.mxu0 %v1027
      %v1059 = vpop.f32.mrf.mxu0
      %v1060 = vadd.f32 0.0, %v1059
      %v1061 = vpop.f32.mrf.mxu0
      %v1062 = vadd.f32 0.0, %v1061
      %1063 = vmatmul.bf16.gmra.mxu0 %v1030
      %v1064 = vpop.f32.mrf.mxu0
      %v1065 = vadd.f32 0.0, %v1064
      %v1066 = vpop.f32.mrf.mxu0
      %1067 = vdwg.mxu0
      %v1068 = vadd.f32 %v932, %v1045
      %v1069 = vadd.f32 %v933, %v1047
      %v1070 = vadd.f32 %v934, %v1050
      %v1071 = vadd.f32 %v935, %v1052
      %v1072 = vadd.f32 %v936, %v1055
      %v1073 = vadd.f32 %v937, %v1057
      %v1074 = vadd.f32 %v938, %v1060
      %v1075 = vadd.f32 %v939, %v1062
      %v1076 = vadd.f32 %v940, %v1065
      %v1077 = vld [vmem:[%s164 + $0x4] sm:$0xe]
      %s1078 = scalar_lea.vmem %s1, 16
      %v1079 = vld [vmem:[%s1078] sm:$0x3]
      %v1081 = vunpack.c.l.b16 %v1077
      %v1082 = vpack.c.b16 %v828, %v1081
      %vm1083 = vcmask 1046528
      %v1084 = vrot.slane %v1082, 1
      %v1085 = vrot.slane %v838, 1
      %v1086 = vsel %vm1083, %v1084, %v1085
      %v1087 = vrot.slane %v839, 1
      %v1088 = vsel %vm1083, %v1085, %v1087
      %v1089 = vrot.slane %v840, 1
      %v1090 = vsel %vm1083, %v1087, %v1089
      %v1091 = vrot.slane %v841, 1
      %v1092 = vsel %vm1083, %v1089, %v1091
      %v1094 = vsel %vm215, %v1086, 0
      %v1097 = vsel %vm215, %v1088, 0
      %v1100 = vsel %vm215, %v1090, 0
      %v1103 = vsel %vm215, %v1092, 0
      %v1106 = vsel %vm215, %v1091, 0
      %v1109 = vsel %vm231, %v1079, 0
      %1111 = vmatpush.bf16.msra.mxu0 0
      %1112 = vmatpush.bf16.msra.mxu0 0
      %1113 = vmatpush.bf16.msra.mxu0 0
      %1114 = vmatpush.bf16.msra.mxu0 0
      %1115 = vmatpush.bf16.msra.mxu0 0
      %1116 = vmatpush.bf16.msra.mxu0 0
      %1117 = vmatpush.bf16.msra.mxu0 0
      %1118 = vmatpush.bf16.msra.mxu0 %v1109
      %1119 = vmatmul.bf16.gmra.mxu0 %v1094
      %v1120 = vpop.f32.mrf.mxu0
      %v1121 = vadd.f32 0.0, %v1120
      %v1122 = vpop.f32.mrf.mxu0
      %v1123 = vadd.f32 0.0, %v1122
      %1124 = vmatmul.bf16.gmra.mxu0 %v1097
      %v1125 = vpop.f32.mrf.mxu0
      %v1126 = vadd.f32 0.0, %v1125
      %v1127 = vpop.f32.mrf.mxu0
      %v1128 = vadd.f32 0.0, %v1127
      %1129 = vmatmul.bf16.gmra.mxu0 %v1100
      %v1130 = vpop.f32.mrf.mxu0
      %v1131 = vadd.f32 0.0, %v1130
      %v1132 = vpop.f32.mrf.mxu0
      %v1133 = vadd.f32 0.0, %v1132
      %1134 = vmatmul.bf16.gmra.mxu0 %v1103
      %v1135 = vpop.f32.mrf.mxu0
      %v1136 = vadd.f32 0.0, %v1135
      %v1137 = vpop.f32.mrf.mxu0
      %v1138 = vadd.f32 0.0, %v1137
      %1139 = vmatmul.bf16.gmra.mxu0 %v1106
      %v1140 = vpop.f32.mrf.mxu0
      %v1141 = vadd.f32 0.0, %v1140
      %v1142 = vpop.f32.mrf.mxu0
      %1143 = vdwg.mxu0
      %v1144 = vadd.f32 %v1068, %v1121
      %v1145 = vadd.f32 %v1069, %v1123
      %v1146 = vadd.f32 %v1070, %v1126
      %v1147 = vadd.f32 %v1071, %v1128
      %v1148 = vadd.f32 %v1072, %v1131
      %v1149 = vadd.f32 %v1073, %v1133
      %v1150 = vadd.f32 %v1074, %v1136
      %v1151 = vadd.f32 %v1075, %v1138
      %v1152 = vadd.f32 %v1076, %v1141
      %v1153 = vld [vmem:[%s2] sm:$0x1]
      %v1154 = vperm.slane %v1153, 0
      %v1155 = vadd.f32 %v1144, %v1154
      %v1156 = vadd.f32 %v1145, %v1154
      %v1157 = vadd.f32 %v1146, %v1154
      %v1158 = vadd.f32 %v1147, %v1154
      %v1159 = vadd.f32 %v1148, %v1154
      %v1160 = vadd.f32 %v1149, %v1154
      %v1161 = vadd.f32 %v1150, %v1154
      %v1162 = vadd.f32 %v1151, %v1154
      %v1163 = vadd.f32 %v1152, %v1154
      %v1164 = vmax.f32 %v1155, 0.0
      %v1165 = vmax.f32 %v1156, 0.0
      %v1166 = vmax.f32 %v1157, 0.0
      %v1167 = vmax.f32 %v1158, 0.0
      %v1168 = vmax.f32 %v1159, 0.0
      %v1169 = vmax.f32 %v1160, 0.0
      %v1170 = vmax.f32 %v1161, 0.0
      %v1171 = vmax.f32 %v1162, 0.0
      %v1172 = vmax.f32 %v1163, 0.0
      %v1173 = vld [vmem:[%s2 + $0x1] sm:$0x1]
      %v1174 = vperm.slane %v1173, 0
      %v1175 = vmul.f32 %v1164, %v1174
      %v1176 = vmul.f32 %v1165, %v1174
      %v1177 = vmul.f32 %v1166, %v1174
      %v1178 = vmul.f32 %v1167, %v1174
      %v1179 = vmul.f32 %v1168, %v1174
      %v1180 = vmul.f32 %v1169, %v1174
      %v1181 = vmul.f32 %v1170, %v1174
      %v1182 = vmul.f32 %v1171, %v1174
      %v1183 = vmul.f32 %v1172, %v1174
      %v1184 = vld [vmem:[%s2 + $0x2] sm:$0x1]
      %v1185 = vperm.slane %v1184, 0
      %v1186 = vadd.f32 %v1175, %v1185
      %v1187 = vadd.f32 %v1176, %v1185
      %v1188 = vadd.f32 %v1177, %v1185
      %v1189 = vadd.f32 %v1178, %v1185
      %v1190 = vadd.f32 %v1179, %v1185
      %v1191 = vadd.f32 %v1180, %v1185
      %v1192 = vadd.f32 %v1181, %v1185
      %v1193 = vadd.f32 %v1182, %v1185
      %v1194 = vadd.f32 %v1183, %v1185
      %1195 = vxpose.xlu0.b32.start [1/16] %v1186, 128
      %1196 = vxpose.xlu0.b32.cont [2/16] %v1187, 128
      %1197 = vxpose.xlu0.b32.cont [3/16] %v1188, 128
      %1198 = vxpose.xlu0.b32.cont [4/16] %v1189, 128
      %1199 = vxpose.xlu0.b32.cont [5/16] %v1190, 128
      %1200 = vxpose.xlu0.b32.cont [6/16] %v1191, 128
      %1201 = vxpose.xlu0.b32.cont [7/16] %v1192, 128
      %1202 = vxpose.xlu0.b32.cont [8/16] %v1193, 128
      %1203 = vxpose.xlu0.b32.cont [9/16] %v1194, 128
      %1204 = vxpose.xlu0.b32.cont [10/16] 0.0, 128
      %1205 = vxpose.xlu0.b32.cont [11/16] 0.0, 128
      %1206 = vxpose.xlu0.b32.cont [12/16] 0.0, 128
      %1207 = vxpose.xlu0.b32.cont [13/16] 0.0, 128
      %1208 = vxpose.xlu0.b32.cont [14/16] 0.0, 128
      %1209 = vxpose.xlu0.b32.cont [15/16] 0.0, 128
      %1210 = vxpose.xlu0.b32.end [16/16] 0.0, 128
      %v1211 = vpop.trf.xlu0
      %v1212 = vpop.trf.xlu0
      %v1213 = vpop.trf.xlu0
      %v1214 = vpop.trf.xlu0
      %v1215 = vpop.trf.xlu0
      %v1216 = vpop.trf.xlu0
      %v1217 = vpop.trf.xlu0
      %v1218 = vpop.trf.xlu0
      %v1219 = vpop.trf.xlu0
      %v1220 = vpop.trf.xlu0
      %v1221 = vpop.trf.xlu0
      %v1222 = vpop.trf.xlu0
      %v1223 = vpop.trf.xlu0
      %v1224 = vpop.trf.xlu0
      %v1225 = vpop.trf.xlu0
      %v1226 = vpop.trf.xlu0
      %vm1227 = vcmask 588800
      %1228 = vst.msk [vmem:[%s168] sm:$0xff] %vm1227, %v1211
      %p1229 = scmp.lt.s32.totalorder %s14, 1
      %s1230 = scalar_select %p1229, %s14, 1
      %s1231 = smul.addr %s1230, 8
      %s1232 = scalar_lea.vmem %s3, %s1231
      // Predicated region
      $region33: #{std_conv_forward.1} parent=31 // pred_check
        %p1233 = pneg %p100
      $region34: #{std_conv_forward.1} parent=31 // pred_check_branch
        %1235 = sbr.rel (%p1233) target = $region36
      $region35: #{std_conv_forward.1} parent=31 // pred_region
        _
      $region36: #{std_conv_forward.1} parent=31 // pred_fallthru
        _
    $region32: #{std_conv_forward.1} parent=5 // pred_fallthru
      _
    %p1236 = scmp.le.s32.totalorder 2, %s9
    // Predicated region
    $region37: #{std_conv_forward.1} parent=5 // pred_check
      %p1237 = pneg %p1236
    $region38: #{std_conv_forward.1} parent=5 // pred_check_branch
      %1239 = sbr.rel (%p1237) target = $region40
    $region39: #{std_conv_forward.1} parent=5 // pred_region
      %s1240 = ssub.s32 %s9, 2
      // Predicated region
      $region41: #{std_conv_forward.1} parent=39 // pred_check
        %p1241 = pneg %p106
      $region42: #{std_conv_forward.1} parent=39 // pred_check_branch
        %1243 = sbr.rel (%p1241) target = $region44
      $region43: #{std_conv_forward.1} parent=39 // pred_region
        %p1244 = scmp.lt.s32.totalorder %s15, 1
        %s1245 = scalar_select %p1244, %s15, 1
        %s1246 = smul.addr %s1245, 8
        %s1247 = scalar_lea.vmem %s3, %s1246
      $region44: #{std_conv_forward.1} parent=39 // pred_fallthru
        _
    $region40: #{std_conv_forward.1} parent=5 // pred_fallthru
      _
  $region6: #{std_conv_forward.1} parent=0 // loop_footer
    %s13 = sadd.s32 1, %s9
  $region7: #{std_conv_forward.1} parent=0 // loop_footer_branch
    %8 = sbr.rel target = $region3
  $region8: #{std_conv_forward.1} parent=0 // loop_exit
    _

</llo_original>
